<compile_context>
chip_gen: v7x
topology: tpu7x:2x2x1
jax: 0.10.0
libtpu: 0.0.40
codegen_flags: <defaults>
</compile_context>

<pallas_src>
import functools

import jax
import jax.numpy as jnp
from jax.experimental import pallas as pl
from jax.experimental.pallas import tpu as pltpu


# ----------------------------------------------------------------------------
# Kernel
# ----------------------------------------------------------------------------
def _layernorm_kernel(x_ref, alpha_ref, bias_ref, o_ref, *, eps, features):
    # One tile of rows: (tile_rows, features). Normalize along last (lane) axis.
    x = x_ref[...].astype(jnp.float32)

    # Two-pass mean/variance: the tile is already resident in VMEM, so the second
    # pass is compute-only and free in this HBM-bound kernel; it avoids the
    # E[x^2]-E[x]^2 cancellation problem for inputs with a large common offset.
    mean = jnp.sum(x, axis=-1, keepdims=True) * jnp.float32(1.0 / features)
    diff = x - mean
    # torch.std default is the UNBIASED estimator (ddof=1).
    var = jnp.sum(diff * diff, axis=-1, keepdims=True) * jnp.float32(
        1.0 / max(features - 1, 1))
    std = jnp.sqrt(var)

    # One exact reciprocal per row (shape (tile_rows, 1)); negligible cost and
    # keeps the 1e-5 tolerance (approx=True alone has ~1e-3 rel error).
    inv = pl.reciprocal(std + jnp.float32(eps), approx=False)

    alpha = alpha_ref[...].astype(jnp.float32)   # (1, features)
    bias = bias_ref[...].astype(jnp.float32)     # (1, features)
    o_ref[...] = (diff * inv * alpha + bias).astype(o_ref.dtype)


# ----------------------------------------------------------------------------
# Tiling / budgeting policy
# ----------------------------------------------------------------------------
def _num_tensorcores():
    """Best-effort TensorCore count per chip; conservative default of 1."""
    try:
        info = pltpu.get_tpu_info()
        for attr in ("num_cores", "core_count", "num_tensorcores", "tensorcore_count"):
            v = getattr(info, attr, None)
            if isinstance(v, int) and v > 0:
                return v
    except Exception:
        pass
    return 1


def _pick_tile_rows(rows, features, dtype_bytes, num_cores=1,
                    target_block_bytes=2 << 20):
    """Row-tile size from a per-input-block byte target (~2 MiB reaches the HBM
    roofline knee), rounded to the dtype's native sublane packing."""
    # Sublane packing: 8 rows (f32), 16 (bf16/f16), 32 (int8/fp8).
    pack = 8 * max(1, 4 // max(dtype_bytes, 1))
    row_bytes = max(features * dtype_bytes, 1)

    tr = max(pack, (target_block_bytes // row_bytes) // pack * pack)
    rows_up = ((rows + pack - 1) // pack) * pack
    tr = min(tr, rows_up)

    # Only split work when there is more than one TensorCore (v7x); on single-TC
    # chips the grid is a sequential loop and splitting is pure overhead.
    if num_cores > 1 and rows > pack:
        min_steps = 2 * num_cores                      # >= 2 steps per core
        want = ((pl.cdiv(rows, min_steps) + pack - 1) // pack) * pack
        # ...but never shrink a block below ~512 KiB of input.
        floor_tr = max(pack, ((512 << 10) // row_bytes) // pack * pack)
        floor_tr = min(floor_tr, rows_up)
        tr = min(tr, max(want, floor_tr))

    return max(pack, tr)


def _layer_norm_xla(x, alpha, bias, eps):
    xf = x.astype(jnp.float32)
    mean = jnp.mean(xf, axis=-1, keepdims=True)
    diff = xf - mean
    var = jnp.sum(diff * diff, axis=-1, keepdims=True) / max(x.shape[-1] - 1, 1)
    std = jnp.sqrt(var)
    y = alpha.astype(jnp.float32) * diff / (std + eps) + bias.astype(jnp.float32)
    return y.astype(x.dtype)


# ----------------------------------------------------------------------------
# Wrapper
# ----------------------------------------------------------------------------
def layer_norm_pallas(x, alpha, bias, eps=1e-6, tile_rows=None):
    """x: (..., features); alpha, bias: (features,)."""
    orig_shape = x.shape
    features = orig_shape[-1]

    # Sub-128 feature dims lower to masked partial stores; plain XLA is at least
    # as fast there and keeps the Pallas path lane-dense for real decoder dims.
    if features < 128:
        return _layer_norm_xla(x, alpha, bias, eps)

    x2 = x.reshape(-1, features)
    rows = x2.shape[0]
    dtype_bytes = jnp.dtype(x.dtype).itemsize

    if tile_rows is None:
        tile_rows = _pick_tile_rows(rows, features, dtype_bytes,
                                    num_cores=_num_tensorcores())

    alpha2 = alpha.reshape(1, features)
    bias2 = bias.reshape(1, features)

    kernel = functools.partial(_layernorm_kernel, eps=eps, features=features)

    grid = (pl.cdiv(rows, tile_rows),)  # partial last block is masked by Pallas

    # Right-size the scoped VMEM ask from the chosen tile: double-buffered in+out
    # blocks, params, f32 temporaries, plus headroom; clamp to [16, 32] MiB.
    block_bytes = tile_rows * features * dtype_bytes
    f32_tmp_bytes = 3 * tile_rows * features * 4
    need = 4 * block_bytes + 4 * features * 4 + f32_tmp_bytes + (2 << 20)
    vmem_limit = int(min(32 << 20, max(16 << 20, need)))

    cost = pl.CostEstimate(
        flops=8 * rows * features,
        transcendentals=2 * rows,
        bytes_accessed=2 * rows * features * dtype_bytes + 2 * features * 4,
    )

    out = pl.pallas_call(
        kernel,
        out_shape=jax.ShapeDtypeStruct((rows, features), x.dtype),
        grid_spec=pl.GridSpec(
            grid=grid,
            in_specs=[
                pl.BlockSpec((tile_rows, features), lambda i: (i, 0)),
                pl.BlockSpec((1, features), lambda i: (0, 0)),
                pl.BlockSpec((1, features), lambda i: (0, 0)),
            ],
            out_specs=pl.BlockSpec((tile_rows, features), lambda i: (i, 0)),
        ),
        compiler_params=pltpu.CompilerParams(
            dimension_semantics=("parallel",),
            vmem_limit_bytes=vmem_limit,
        ),
        cost_estimate=cost,
    )(x2, alpha2, bias2)

    return out.reshape(orig_shape)


class DecoderPallas:
    """JAX/Pallas equivalent of the PyTorch Decoder."""

    def __init__(self, features: int, layers=()):
        self.features = features
        self.layers = tuple(layers)  # each: fn(x, enc_out, src_mask, tgt_mask) -> x
        # LayerNormalization params: alpha = ones, bias = zeros (as in __init__).
        self.alpha = jnp.ones((features,), dtype=jnp.float32)
        self.bias = jnp.zeros((features,), dtype=jnp.float32)
        self.eps = 1e-6

    def __call__(self, x, encoder_output, src_mask, tgt_mask):
        for layer in self.layers:
            x = layer(x, encoder_output, src_mask, tgt_mask)
        return layer_norm_pallas(x, self.alpha, self.bias, eps=self.eps)


def _layer_norm_ref(x, alpha, bias, eps=1e-6):
    # Direct translation of the torch module (two-pass, unbiased std, eps on std).
    x = x.astype(jnp.float32)
    mean = jnp.mean(x, axis=-1, keepdims=True)
    diff = x - mean
    var = jnp.sum(diff * diff, axis=-1, keepdims=True) / max(x.shape[-1] - 1, 1)
    std = jnp.sqrt(var)
    return alpha * diff / (std + eps) + bias


if __name__ == "__main__":
    key = jax.random.PRNGKey(0)
    batch, seq, features = 2, 8, 128  # lane-dense features -> Pallas path

    k1, k2 = jax.random.split(key)
    # Add a large common offset to stress the two-pass variance path.
    x = jax.random.normal(k1, (batch, seq, features), dtype=jnp.float32) + 3.0
    encoder_output = jax.random.normal(k2, (batch, seq, features), dtype=jnp.float32)
    src_mask = jnp.ones((batch, 1, 1, seq), dtype=jnp.float32)
    tgt_mask = jnp.ones((batch, 1, seq, seq), dtype=jnp.float32)

    decoder = DecoderPallas(features, layers=())
    out = decoder(x, encoder_output, src_mask, tgt_mask)
    out = jax.block_until_ready(out)

    ref = _layer_norm_ref(x, decoder.alpha, decoder.bias, decoder.eps)
    assert out.shape == (batch, seq, features)
    assert jnp.allclose(out, ref, atol=1e-5, rtol=1e-5)

    # Small-feature sanity check (features < 128 -> XLA fallback branch).
    small = DecoderPallas(32, layers=())
    xs = jax.random.normal(jax.random.PRNGKey(1), (2, 8, 32), dtype=jnp.float32)
    outs = jax.block_until_ready(small(xs, encoder_output, src_mask, tgt_mask))
    refs = _layer_norm_ref(xs, small.alpha, small.bias, small.eps)
    assert jnp.allclose(outs, refs, atol=1e-5, rtol=1e-5)

    print("KERNEL_OK")
</pallas_src>

<mosaic_0001>
module attributes {stable_mosaic.version = 11 : i64} {
  func.func @_layernorm_kernel(%arg0: i32, %arg1: memref<16x128xf32, #tpu.memory_space<vmem>>, %arg2: memref<1x128xf32, #tpu.memory_space<vmem>>, %arg3: memref<1x128xf32, #tpu.memory_space<vmem>>, %arg4: memref<16x128xf32, #tpu.memory_space<vmem>>) attributes {dimension_semantics = [#tpu.dimension_semantics<parallel>], iteration_bounds = array<i64: 1>, scalar_prefetch = 0 : i64, scratch_operands = 0 : i64, tpu.core_type = #tpu.core_type<tc>, window_params = [{transform_indices = @transform_0, window_bounds = array<i64: 16, 128>}, {pipeline_mode = #tpu.pipeline_mode<synchronous>, transform_indices = @transform_1, window_bounds = array<i64: 1, 128>}, {pipeline_mode = #tpu.pipeline_mode<synchronous>, transform_indices = @transform_2, window_bounds = array<i64: 1, 128>}, {transform_indices = @transform_3, window_bounds = array<i64: 16, 128>}]} {
    %c0 = arith.constant 0 : index
    %c0_0 = arith.constant 0 : index
    %0 = vector.load %arg1[%c0, %c0_0] : memref<16x128xf32, #tpu.memory_space<vmem>>, vector<16x128xf32>
    %cst = arith.constant dense<0.000000e+00> : vector<16xf32>
    %1 = vector.multi_reduction <add>, %0, %cst [1] : vector<16x128xf32> to vector<16xf32>
    %2 = vector.shape_cast %1 : vector<16xf32> to vector<16x1xf32>
    %cst_1 = arith.constant 7.812500e-03 : f32
    %3 = vector.broadcast %cst_1 : f32 to vector<16x1xf32>
    %4 = arith.mulf %2, %3 : vector<16x1xf32>
    %5 = vector.broadcast %4 : vector<16x1xf32> to vector<16x128xf32>
    %6 = arith.subf %0, %5 : vector<16x128xf32>
    %7 = arith.mulf %6, %6 : vector<16x128xf32>
    %cst_2 = arith.constant dense<0.000000e+00> : vector<16xf32>
    %8 = vector.multi_reduction <add>, %7, %cst_2 [1] : vector<16x128xf32> to vector<16xf32>
    %9 = vector.shape_cast %8 : vector<16xf32> to vector<16x1xf32>
    %cst_3 = arith.constant 0.00787401571 : f32
    %10 = vector.broadcast %cst_3 : f32 to vector<16x1xf32>
    %11 = arith.mulf %9, %10 : vector<16x1xf32>
    %12 = math.sqrt %11 : vector<16x1xf32>
    %cst_4 = arith.constant 9.99999997E-7 : f32
    %13 = vector.broadcast %cst_4 : f32 to vector<16x1xf32>
    %14 = arith.addf %12, %13 : vector<16x1xf32>
    %15 = tpu.reciprocal %14 : vector<16x1xf32> -> vector<16x1xf32>
    %c0_5 = arith.constant 0 : index
    %c0_6 = arith.constant 0 : index
    %16 = vector.load %arg2[%c0_5, %c0_6] : memref<1x128xf32, #tpu.memory_space<vmem>>, vector<1x128xf32>
    %c0_7 = arith.constant 0 : index
    %c0_8 = arith.constant 0 : index
    %17 = vector.load %arg3[%c0_7, %c0_8] : memref<1x128xf32, #tpu.memory_space<vmem>>, vector<1x128xf32>
    %18 = vector.broadcast %15 : vector<16x1xf32> to vector<16x128xf32>
    %19 = arith.mulf %6, %18 : vector<16x128xf32>
    %20 = vector.broadcast %16 : vector<1x128xf32> to vector<16x128xf32>
    %21 = arith.mulf %19, %20 : vector<16x128xf32>
    %22 = vector.broadcast %17 : vector<1x128xf32> to vector<16x128xf32>
    %23 = arith.addf %21, %22 : vector<16x128xf32>
    %c0_9 = arith.constant 0 : index
    %c0_10 = arith.constant 0 : index
    %24 = vector.load %arg4[%c0_9, %c0_10] : memref<16x128xf32, #tpu.memory_space<vmem>>, vector<16x128xf32>
    tpu.vector_store %arg4[%c0_9, %c0_10], %23 {strides = array<i32>} : memref<16x128xf32, #tpu.memory_space<vmem>>, vector<16x128xf32>,
    return
  }
  func.func @transform_0(%arg0: i32) -> (i32, i32) {
    %c0_i32 = arith.constant 0 : i32
    %c0_i32_0 = arith.constant 0 : i32
    return %arg0, %c0_i32 : i32, i32
  }
  func.func @transform_1(%arg0: i32) -> (i32, i32) {
    %c0_i32 = arith.constant 0 : i32
    %c0_i32_0 = arith.constant 0 : i32
    %c0_i32_1 = arith.constant 0 : i32
    return %c0_i32, %c0_i32_0 : i32, i32
  }
  func.func @transform_2(%arg0: i32) -> (i32, i32) {
    %c0_i32 = arith.constant 0 : i32
    %c0_i32_0 = arith.constant 0 : i32
    %c0_i32_1 = arith.constant 0 : i32
    return %c0_i32, %c0_i32_0 : i32, i32
  }
  func.func @transform_3(%arg0: i32) -> (i32, i32) {
    %c0_i32 = arith.constant 0 : i32
    %c0_i32_0 = arith.constant 0 : i32
    return %arg0, %c0_i32 : i32, i32
  }
}

</mosaic_0001>

<llo_original>
// kernel: tpu_custom_call.1
$region0: #{tpu_custom_call.1}
  #allocation0 [shape = 'u32[]', space=smem, size = 0x4, offset = 0x4, fixed_abs, tag = 'smem constant byte address 0x4 - core index']
  #allocation1 [shape = 'u32[144,128]{1,0:T(1,128)}', space=vmem, size = 0x12000, scoped, tag = 'internal scratch']
  %s0 = inlined_call_operand.hbm [shape: f32[16,128], index: 0, kind: input, shape index: {}]
  %s1 = inlined_call_operand.vmem [shape: f32[1,128], index: 1, kind: input, shape index: {}]
  %s2 = inlined_call_operand.vmem [shape: f32[1,128], index: 2, kind: input, shape index: {}]
  %s3 = inlined_call_operand.hbm [shape: f32[16,128], index: 3, kind: output, shape index: {}]
  %s4 = sld [smem:[#allocation0]]
  $region26: #{tpu_custom_call.1} parent=0
    _
  %s6 = ssub.s32 1, %s4
  %s7 = scalar_select 0, %s6, %s4
  $region1: #{tpu_custom_call.1} parent=0
    #allocation2 [shape = 'u8[8192]{0}', space=vmem, size = 0x2000, scoped, tag = 'input window, operand 0, single buffered']
    #allocation3 [shape = 's32[1]{0}', space=sflag, size = 0x4, scoped, tag = 'scoped memory for tpu_custom_call.1']
    #allocation4 [shape = 's32[1]{0}', space=sflag, size = 0x4, scoped, tag = 'scoped memory for tpu_custom_call.1']
    #allocation5 [shape = 'u8[8192]{0}', space=vmem, size = 0x2000, scoped, tag = 'output window, operand 0, single buffered']
    %8 = vsyncpa [#allocation3], 0
    %9 = vsyncpa [#allocation4], 0
    // Predicated region
    $region2: #{tpu_custom_call.1} parent=1 // pred_check
      _
    $region3: #{tpu_custom_call.1} parent=1 // pred_check_branch
      %11 = sbr.rel (0) target = $region5
    $region4: #{tpu_custom_call.1} parent=1 // pred_region
      %s13 = ssub.s32 256, 256
      %14 = vsyncadd [#allocation3], %s13
      %s15 = sshll.u32 [#allocation2], 4
      %s16 = int_to_ptr.vmem [resolvable:$true] %s15
      %21 = dma.hbm_to_vmem [thread:$0]  %s0, 256, %s16, [#allocation3], 128, 128, 8
    $region5: #{tpu_custom_call.1} parent=1 // pred_fallthru
      _
    // Predicated region
    $region6: #{tpu_custom_call.1} parent=1 // pred_check
      _
    $region7: #{tpu_custom_call.1} parent=1 // pred_check_branch
      %23 = sbr.rel (0) target = $region9
    $region8: #{tpu_custom_call.1} parent=1 // pred_region
      _
    $region9: #{tpu_custom_call.1} parent=1 // pred_fallthru
      _
    // Predicated region
    $region10: #{tpu_custom_call.1} parent=1 // pred_check
      _
    $region11: #{tpu_custom_call.1} parent=1 // pred_check_branch
      %25 = sbr.rel (0) target = $region13
    $region12: #{tpu_custom_call.1} parent=1 // pred_region
      _
    $region13: #{tpu_custom_call.1} parent=1 // pred_fallthru
      _
    // Predicated region
    $region14: #{tpu_custom_call.1} parent=1 // pred_check
      _
    $region15: #{tpu_custom_call.1} parent=1 // pred_check_branch
      %27 = sbr.rel (0) target = $region17
    $region16: #{tpu_custom_call.1} parent=1 // pred_region
      %28 = dma.done [#allocation3], 256
    $region17: #{tpu_custom_call.1} parent=1 // pred_fallthru
      _
    %v29 = vld [vmem:[#allocation2] sm:$0xff]
    %v30 = vld [vmem:[#allocation2 + $0x8] sm:$0xff]
    %31 = vadd.xlane.f32.xlu0 %v29
    %v32 = vpop.xlane.xlu0 %31
    %33 = vadd.xlane.f32.xlu0 %v30
    %v34 = vpop.xlane.xlu0 %33
    %v35 = vmul.f32 %v32, 0.0078125
    %v36 = vmul.f32 %v34, 0.0078125
    %v37 = vsub.f32 %v29, %v35
    %v38 = vsub.f32 %v30, %v36
    %v39 = vmul.f32 %v37, %v37
    %v40 = vmul.f32 %v38, %v38
    %41 = vadd.xlane.f32.xlu0 %v39
    %v42 = vpop.xlane.xlu0 %41
    %43 = vadd.xlane.f32.xlu0 %v40
    %v44 = vpop.xlane.xlu0 %43
    %v45 = vmul.f32 %v42, 0.007874016
    %v46 = vmul.f32 %v44, 0.007874016
    %v47 = vrsqrt.pop %v45
    %v48 = vmul.f32 %v45, %v47
    %vm49 = vcmp.eq.f32.partialorder %v45, inf
    %v50 = vsel %vm49, %v45, %v48
    %vm51 = vcmp.eq.f32.partialorder %v45, 0.0
    %v52 = vand.u32 %v45, 2147483648
    %v53 = vsel %vm51, %v52, %v50
    %v54 = vrsqrt.pop %v46
    %v55 = vmul.f32 %v46, %v54
    %vm56 = vcmp.eq.f32.partialorder %v46, inf
    %v57 = vsel %vm56, %v46, %v55
    %vm58 = vcmp.eq.f32.partialorder %v46, 0.0
    %v59 = vand.u32 %v46, 2147483648
    %v60 = vsel %vm58, %v59, %v57
    %v61 = vadd.f32 %v53, 1e-06
    %v62 = vadd.f32 %v60, 1e-06
    %v63 = vrcp.pop %v61
    %v64 = vrcp.pop %v62
    %v65 = vld [vmem:[%s1] sm:$0x1]
    %v66 = vld [vmem:[%s2] sm:$0x1]
    %v67 = vmul.f32 %v37, %v63
    %v68 = vmul.f32 %v38, %v64
    %v70 = vlaneseq
    %v71 = vshrl.u32 %v70, 7
    %v72 = vsub.s32 0, %v71
    %v73 = vrot.slane %v65, %v72
    %v75 = vmul.f32 %v67, %v73
    %v76 = vmul.f32 %v68, %v73
    %v78 = vlaneseq
    %v79 = vshrl.u32 %v78, 7
    %v80 = vsub.s32 0, %v79
    %v81 = vrot.slane %v66, %v80
    %v83 = vadd.f32 %v75, %v81
    %v84 = vadd.f32 %v76, %v81
    %85 = vst [vmem:[#allocation5] sm:$0xff] %v83
    %86 = vst [vmem:[#allocation5 + $0x8] sm:$0xff] %v84
    // Predicated region
    $region18: #{tpu_custom_call.1} parent=1 // pred_check
      _
    $region19: #{tpu_custom_call.1} parent=1 // pred_check_branch
      %88 = sbr.rel (0) target = $region21
    $region20: #{tpu_custom_call.1} parent=1 // pred_region
      %s90 = ssub.s32 256, 256
      %91 = vsyncadd [#allocation4], %s90
      %s92 = sshll.u32 [#allocation5], 4
      %s93 = int_to_ptr.vmem [resolvable:$true] %s92
      %98 = dma.vmem_to_hbm [thread:$0]  %s93, 256, %s3, [#allocation4], 128, 128, 8
    $region21: #{tpu_custom_call.1} parent=1 // pred_fallthru
      _
    // Predicated region
    $region22: #{tpu_custom_call.1} parent=1 // pred_check
      _
    $region23: #{tpu_custom_call.1} parent=1 // pred_check_branch
      %100 = sbr.rel (0) target = $region25
    $region24: #{tpu_custom_call.1} parent=1 // pred_region
      %101 = dma.done [#allocation4], 256
    $region25: #{tpu_custom_call.1} parent=1 // pred_fallthru
      _
    %102 = vsyncpa [#allocation3], 1
    %103 = vsyncpa [#allocation4], 1

</llo_original>
